<compile_context>
chip_gen: v7x
topology: tpu7x:2x2x1
jax: 0.10.0
libtpu: 0.0.40
codegen_flags: <defaults>
</compile_context>

<pallas_src>
import functools
import itertools
from math import comb

import numpy as np
import jax
import jax.numpy as jnp
from jax.experimental import pallas as pl
from jax.experimental.pallas import tpu as pltpu


# ---------------------------------------------------------------------------
# SINDy library helpers (mirror sindy_library / library_size from the repo)
# ---------------------------------------------------------------------------
def library_size(z_dim, poly_order, include_constant=True, use_sine=False):
    l = 0
    for k in range(poly_order + 1):
        l += comb(z_dim + k - 1, k)
    if use_sine:
        l += z_dim
    if not include_constant:
        l -= 1
    return l


def _poly_index_tuples(z_dim, poly_order):
    """Monomial index tuples in the same (i <= j <= k ...) nested-loop order
    used by sindy_library()."""
    tuples = []
    for order in range(1, poly_order + 1):
        tuples.extend(itertools.combinations_with_replacement(range(z_dim), order))
    return tuples


# ---------------------------------------------------------------------------
# Pallas kernel: library construction + coefficient masking + dz matmul.
# All arrays are in the transposed (lane-dense) layout:
#   x_ref       : (Z, TB)   batch on lanes
#   coef_t_ref  : (Z, L)    sindy_coefficients^T
#   mask_t_ref  : (Z, L)    threshold_mask^T
#   dz_ref      : (Z, TB)   dz^T
#   coef_out_ref: (Z, L)    masked coefficients^T
# ---------------------------------------------------------------------------
def _sindy_kernel(x_ref, coef_t_ref, mask_t_ref, dz_ref, coef_out_ref, *,
                  poly_order, include_constant, include_sine):
    x_t = x_ref[...]                                    # (Z, TB), f32
    z_dim = x_t.shape[0]
    z_rows = [x_t[i:i + 1, :] for i in range(z_dim)]    # Z lane-dense rows

    # Build the SINDy library as (L, TB) rows, entirely in registers.
    lib_rows = []
    if include_constant:
        lib_rows.append(jnp.ones_like(z_rows[0]))
    for idxs in _poly_index_tuples(z_dim, poly_order):
        row = z_rows[idxs[0]]
        for i in idxs[1:]:
            row = row * z_rows[i]                       # full-width VPU multiply
        lib_rows.append(row)
    if include_sine:
        for i in range(z_dim):
            lib_rows.append(jnp.sin(z_rows[i]))         # EUP
    lib = jnp.concatenate(lib_rows, axis=0)             # (L, TB)

    # get_masked_coefficients(): elementwise mask on the VPU.
    masked_t = coef_t_ref[...] * mask_t_ref[...]        # (Z, L)
    coef_out_ref[...] = masked_t                        # same value every step

    # dz^T = masked^T @ library^T : (Z, L) @ (L, TB) -> (Z, TB) on the MXU.
    dz_ref[...] = jnp.dot(masked_t, lib,
                          preferred_element_type=jnp.float32,
                          precision=jax.lax.Precision.HIGHEST)


# ---------------------------------------------------------------------------
# Wrapper: layout plumbing (transposes / padding) happens here, not in-kernel.
# ---------------------------------------------------------------------------
_BATCH_BLOCK = 512   # multiple of 128 lanes; only used when batch > 512


def sindy_forward(x, sindy_coefficients, threshold_mask, *,
                  poly_order, include_constant, include_sine):
    """Pallas implementation of Net.forward(x) -> (dz, masked_coefficients)."""
    x = jnp.asarray(x, jnp.float32)
    batch, z_dim = x.shape
    lib_dim = sindy_coefficients.shape[0]
    assert lib_dim == library_size(z_dim, poly_order, include_constant,
                                   include_sine)

    # Transposed, lane-dense layout (wrapper-side layout plumbing only).
    x_t = x.T                                                   # (Z, B)
    coef_t = jnp.asarray(sindy_coefficients, jnp.float32).T     # (Z, L)
    mask_t = jnp.asarray(threshold_mask, jnp.float32).T         # (Z, L)

    if batch > _BATCH_BLOCK:
        tb = _BATCH_BLOCK
        padded_b = pl.cdiv(batch, tb) * tb
        if padded_b != batch:
            x_t = jnp.pad(x_t, ((0, 0), (0, padded_b - batch)))
    else:
        tb = batch               # single full-array block
        padded_b = batch
    grid = (padded_b // tb,)

    kernel = functools.partial(_sindy_kernel,
                               poly_order=poly_order,
                               include_constant=include_constant,
                               include_sine=include_sine)

    dz_t, masked_t_out = pl.pallas_call(
        kernel,
        out_shape=(jax.ShapeDtypeStruct((z_dim, padded_b), jnp.float32),
                   jax.ShapeDtypeStruct((z_dim, lib_dim), jnp.float32)),
        grid=grid,
        in_specs=[pl.BlockSpec((z_dim, tb), lambda i: (0, i)),
                  pl.BlockSpec((z_dim, lib_dim), lambda i: (0, 0)),
                  pl.BlockSpec((z_dim, lib_dim), lambda i: (0, 0))],
        out_specs=(pl.BlockSpec((z_dim, tb), lambda i: (0, i)),
                   pl.BlockSpec((z_dim, lib_dim), lambda i: (0, 0))),
        compiler_params=pltpu.CompilerParams(
            dimension_semantics=("parallel",)),
    )(x_t, coef_t, mask_t)

    dz = dz_t[:, :batch].T        # (B, Z)   (torch .squeeze(1) is a no-op here)
    coefs = masked_t_out.T        # (L, Z)
    return dz, coefs


# ---------------------------------------------------------------------------
# Pure-JAX reference (same library ordering, f32 HIGHEST precision)
# ---------------------------------------------------------------------------
def sindy_forward_ref(x, sindy_coefficients, threshold_mask, *,
                      poly_order, include_constant, include_sine):
    x = jnp.asarray(x, jnp.float32)
    batch, z_dim = x.shape
    cols = []
    if include_constant:
        cols.append(jnp.ones((batch, 1), jnp.float32))
    for idxs in _poly_index_tuples(z_dim, poly_order):
        col = x[:, idxs[0]:idxs[0] + 1]
        for i in idxs[1:]:
            col = col * x[:, i:i + 1]
        cols.append(col)
    if include_sine:
        for i in range(z_dim):
            cols.append(jnp.sin(x[:, i:i + 1]))
    lib = jnp.concatenate(cols, axis=1)
    masked = (jnp.asarray(sindy_coefficients, jnp.float32)
              * jnp.asarray(threshold_mask, jnp.float32))
    dz = jnp.dot(lib, masked, precision=jax.lax.Precision.HIGHEST)
    return dz, masked


if __name__ == "__main__":
    # Module configuration (args / hyperparams equivalents).
    z_dim = 3
    poly_order = 3
    include_constant = True
    include_sine = True
    batch = 8

    L = library_size(z_dim, poly_order, include_constant, include_sine)  # 23

    key = jax.random.PRNGKey(0)
    k_x, k_c, k_x2 = jax.random.split(key, 3)
    x = jax.random.normal(k_x, (batch, z_dim), dtype=jnp.float32)
    # sindy_coefficients ~ Normal(0, 0.1); threshold_mask = ones (as in __init__).
    sindy_coefficients = 0.1 * jax.random.normal(k_c, (L, z_dim), dtype=jnp.float32)
    threshold_mask = jnp.ones((L, z_dim), dtype=jnp.float32)

    fwd = functools.partial(sindy_forward, poly_order=poly_order,
                            include_constant=include_constant,
                            include_sine=include_sine)
    ref = functools.partial(sindy_forward_ref, poly_order=poly_order,
                            include_constant=include_constant,
                            include_sine=include_sine)

    # Small-batch path (grid of 1, full-array blocks).
    dz, coefs = fwd(x, sindy_coefficients, threshold_mask)
    jax.block_until_ready((dz, coefs))
    dz_ref, coefs_ref = ref(x, sindy_coefficients, threshold_mask)
    np.testing.assert_allclose(np.asarray(coefs), np.asarray(coefs_ref),
                               rtol=1e-6, atol=1e-6)
    np.testing.assert_allclose(np.asarray(dz), np.asarray(dz_ref),
                               rtol=1e-4, atol=1e-5)
    assert dz.shape == (batch, z_dim) and coefs.shape == (L, z_dim)

    # Batch-gridded / padded path (640 -> padded 1024, grid of 2 blocks of 512).
    batch2 = 640
    x2 = jax.random.normal(k_x2, (batch2, z_dim), dtype=jnp.float32)
    dz2, coefs2 = fwd(x2, sindy_coefficients, threshold_mask)
    jax.block_until_ready((dz2, coefs2))
    dz2_ref, _ = ref(x2, sindy_coefficients, threshold_mask)
    np.testing.assert_allclose(np.asarray(dz2), np.asarray(dz2_ref),
                               rtol=1e-4, atol=1e-5)
    assert dz2.shape == (batch2, z_dim)

    print("KERNEL_OK")
</pallas_src>

<mosaic_0001>
module attributes {stable_mosaic.version = 11 : i64} {
  func.func @_sindy_kernel(%arg0: i32, %arg1: memref<3x8xf32, #tpu.memory_space<vmem>>, %arg2: memref<3x23xf32, #tpu.memory_space<vmem>>, %arg3: memref<3x23xf32, #tpu.memory_space<vmem>>, %arg4: memref<3x8xf32, #tpu.memory_space<vmem>>, %arg5: memref<3x23xf32, #tpu.memory_space<vmem>>) attributes {dimension_semantics = [#tpu.dimension_semantics<parallel>], iteration_bounds = array<i64: 1>, scalar_prefetch = 0 : i64, scratch_operands = 0 : i64, tpu.core_type = #tpu.core_type<tc>, window_params = [{transform_indices = @transform_0, window_bounds = array<i64: 3, 8>}, {pipeline_mode = #tpu.pipeline_mode<synchronous>, transform_indices = @transform_1, window_bounds = array<i64: 3, 23>}, {pipeline_mode = #tpu.pipeline_mode<synchronous>, transform_indices = @transform_2, window_bounds = array<i64: 3, 23>}, {transform_indices = @transform_3, window_bounds = array<i64: 3, 8>}, {pipeline_mode = #tpu.pipeline_mode<synchronous>, transform_indices = @transform_4, window_bounds = array<i64: 3, 23>}]} {
    %c0 = arith.constant 0 : index
    %c0_0 = arith.constant 0 : index
    %0 = vector.load %arg1[%c0, %c0_0] : memref<3x8xf32, #tpu.memory_space<vmem>>, vector<3x8xf32>
    %1 = vector.extract_strided_slice %0 {offsets = [0, 0], sizes = [1, 8], strides = [1, 1]} : vector<3x8xf32> to vector<1x8xf32>
    %2 = vector.extract_strided_slice %0 {offsets = [1, 0], sizes = [1, 8], strides = [1, 1]} : vector<3x8xf32> to vector<1x8xf32>
    %3 = vector.extract_strided_slice %0 {offsets = [2, 0], sizes = [1, 8], strides = [1, 1]} : vector<3x8xf32> to vector<1x8xf32>
    %cst = arith.constant 1.000000e+00 : f32
    %4 = vector.broadcast %cst : f32 to vector<1x8xf32>
    %5 = arith.mulf %1, %1 : vector<1x8xf32>
    %6 = arith.mulf %1, %2 : vector<1x8xf32>
    %7 = arith.mulf %1, %3 : vector<1x8xf32>
    %8 = arith.mulf %2, %2 : vector<1x8xf32>
    %9 = arith.mulf %2, %3 : vector<1x8xf32>
    %10 = arith.mulf %3, %3 : vector<1x8xf32>
    %11 = arith.mulf %1, %1 : vector<1x8xf32>
    %12 = arith.mulf %11, %1 : vector<1x8xf32>
    %13 = arith.mulf %1, %1 : vector<1x8xf32>
    %14 = arith.mulf %13, %2 : vector<1x8xf32>
    %15 = arith.mulf %1, %1 : vector<1x8xf32>
    %16 = arith.mulf %15, %3 : vector<1x8xf32>
    %17 = arith.mulf %1, %2 : vector<1x8xf32>
    %18 = arith.mulf %17, %2 : vector<1x8xf32>
    %19 = arith.mulf %1, %2 : vector<1x8xf32>
    %20 = arith.mulf %19, %3 : vector<1x8xf32>
    %21 = arith.mulf %1, %3 : vector<1x8xf32>
    %22 = arith.mulf %21, %3 : vector<1x8xf32>
    %23 = arith.mulf %2, %2 : vector<1x8xf32>
    %24 = arith.mulf %23, %2 : vector<1x8xf32>
    %25 = arith.mulf %2, %2 : vector<1x8xf32>
    %26 = arith.mulf %25, %3 : vector<1x8xf32>
    %27 = arith.mulf %2, %3 : vector<1x8xf32>
    %28 = arith.mulf %27, %3 : vector<1x8xf32>
    %29 = arith.mulf %3, %3 : vector<1x8xf32>
    %30 = arith.mulf %29, %3 : vector<1x8xf32>
    %31 = math.sin %1 : vector<1x8xf32>
    %32 = math.sin %2 : vector<1x8xf32>
    %33 = math.sin %3 : vector<1x8xf32>
    %34 = tpu.concatenate %4, %1, %2, %3, %5, %6, %7, %8, %9, %10, %12, %14, %16, %18, %20, %22 in 0 : vector<1x8xf32>, vector<1x8xf32>, vector<1x8xf32>, vector<1x8xf32>, vector<1x8xf32>, vector<1x8xf32>, vector<1x8xf32>, vector<1x8xf32>, vector<1x8xf32>, vector<1x8xf32>, vector<1x8xf32>, vector<1x8xf32>, vector<1x8xf32>, vector<1x8xf32>, vector<1x8xf32>, vector<1x8xf32> -> vector<16x8xf32>
    %35 = tpu.concatenate %24, %26, %28, %30, %31, %32, %33 in 0 : vector<1x8xf32>, vector<1x8xf32>, vector<1x8xf32>, vector<1x8xf32>, vector<1x8xf32>, vector<1x8xf32>, vector<1x8xf32> -> vector<7x8xf32>
    %36 = tpu.concatenate %34, %35 in 0 : vector<16x8xf32>, vector<7x8xf32> -> vector<23x8xf32>
    %c0_1 = arith.constant 0 : index
    %c0_2 = arith.constant 0 : index
    %37 = vector.load %arg2[%c0_1, %c0_2] : memref<3x23xf32, #tpu.memory_space<vmem>>, vector<3x23xf32>
    %c0_3 = arith.constant 0 : index
    %c0_4 = arith.constant 0 : index
    %38 = vector.load %arg3[%c0_3, %c0_4] : memref<3x23xf32, #tpu.memory_space<vmem>>, vector<3x23xf32>
    %39 = arith.mulf %37, %38 : vector<3x23xf32>
    %c0_5 = arith.constant 0 : index
    %c0_6 = arith.constant 0 : index
    %40 = vector.load %arg5[%c0_5, %c0_6] : memref<3x23xf32, #tpu.memory_space<vmem>>, vector<3x23xf32>
    tpu.vector_store %arg5[%c0_5, %c0_6], %39 {strides = array<i32>} : memref<3x23xf32, #tpu.memory_space<vmem>>, vector<3x23xf32>,
    %cst_7 = arith.constant dense<0.000000e+00> : vector<3x8xf32>
    %41 = tpu.matmul %39, %36, %cst_7 {dimension_numbers = #tpu.dot_dimension_numbers<[1], [0], [0], [1], [0, 0, 1, 1], [], []>, precision = #tpu.contract_precision<fp32>} : vector<3x23xf32>, vector<23x8xf32>, vector<3x8xf32> -> vector<3x8xf32>
    %c0_8 = arith.constant 0 : index
    %c0_9 = arith.constant 0 : index
    %42 = vector.load %arg4[%c0_8, %c0_9] : memref<3x8xf32, #tpu.memory_space<vmem>>, vector<3x8xf32>
    tpu.vector_store %arg4[%c0_8, %c0_9], %41 {strides = array<i32>} : memref<3x8xf32, #tpu.memory_space<vmem>>, vector<3x8xf32>,
    return
  }
  func.func @transform_0(%arg0: i32) -> (i32, i32) {
    %c0_i32 = arith.constant 0 : i32
    %c0_i32_0 = arith.constant 0 : i32
    return %c0_i32, %arg0 : i32, i32
  }
  func.func @transform_1(%arg0: i32) -> (i32, i32) {
    %c0_i32 = arith.constant 0 : i32
    %c0_i32_0 = arith.constant 0 : i32
    %c0_i32_1 = arith.constant 0 : i32
    return %c0_i32, %c0_i32_0 : i32, i32
  }
  func.func @transform_2(%arg0: i32) -> (i32, i32) {
    %c0_i32 = arith.constant 0 : i32
    %c0_i32_0 = arith.constant 0 : i32
    %c0_i32_1 = arith.constant 0 : i32
    return %c0_i32, %c0_i32_0 : i32, i32
  }
  func.func @transform_3(%arg0: i32) -> (i32, i32) {
    %c0_i32 = arith.constant 0 : i32
    %c0_i32_0 = arith.constant 0 : i32
    return %c0_i32, %arg0 : i32, i32
  }
  func.func @transform_4(%arg0: i32) -> (i32, i32) {
    %c0_i32 = arith.constant 0 : i32
    %c0_i32_0 = arith.constant 0 : i32
    %c0_i32_1 = arith.constant 0 : i32
    return %c0_i32, %c0_i32_0 : i32, i32
  }
}

</mosaic_0001>

<llo_original>
// kernel: tpu_custom_call.1
$region0: #{tpu_custom_call.1}
  #allocation0 [shape = 'u32[]', space=smem, size = 0x4, offset = 0x4, fixed_abs, tag = 'smem constant byte address 0x4 - core index']
  #allocation1 [shape = 'u32[144,128]{1,0:T(1,128)}', space=vmem, size = 0x12000, scoped, tag = 'internal scratch']
  %s0 = inlined_call_operand.hbm [shape: f32[3,8], index: 0, kind: input, shape index: {}]
  %s1 = inlined_call_operand.hbm [shape: f32[3,23], index: 1, kind: input, shape index: {}]
  %s2 = inlined_call_operand.vmem [shape: f32[3,23], index: 2, kind: input, shape index: {}]
  %s3 = inlined_call_operand.hbm [shape: f32[3,8], index: 3, kind: output, shape index: {0}]
  %s4 = inlined_call_operand.hbm [shape: f32[3,23], index: 4, kind: output, shape index: {1}]
  %5 = xla_tuple %s3, %s4
  %s6 = sld [smem:[#allocation0]]
  $region38: #{tpu_custom_call.1} parent=0
    _
  %s8 = ssub.s32 1, %s6
  %s9 = scalar_select 0, %s8, %s6
  $region1: #{tpu_custom_call.1} parent=0
    #allocation2 [shape = 'u8[2048]{0}', space=vmem, size = 0x800, scoped, tag = 'input window, operand 0, single buffered']
    #allocation3 [shape = 's32[1]{0}', space=sflag, size = 0x4, scoped, tag = 'scoped memory for tpu_custom_call.1']
    #allocation4 [shape = 's32[1]{0}', space=sflag, size = 0x4, scoped, tag = 'scoped memory for tpu_custom_call.1']
    #allocation5 [shape = 'u8[2048]{0}', space=vmem, size = 0x800, scoped, tag = 'input window, operand 1, single buffered']
    #allocation6 [shape = 's32[1]{0}', space=sflag, size = 0x4, scoped, tag = 'scoped memory for tpu_custom_call.1']
    #allocation7 [shape = 'u8[2048]{0}', space=vmem, size = 0x800, scoped, tag = 'output window, operand 0, single buffered']
    #allocation8 [shape = 'u8[2048]{0}', space=vmem, size = 0x800, scoped, tag = 'output window, operand 1, single buffered']
    #allocation9 [shape = 's32[1]{0}', space=sflag, size = 0x4, scoped, tag = 'scoped memory for tpu_custom_call.1']
    %10 = vsyncpa [#allocation3], 0
    %11 = vsyncpa [#allocation6], 0
    %12 = vsyncpa [#allocation4], 0
    %13 = vsyncpa [#allocation9], 0
    // Predicated region
    $region2: #{tpu_custom_call.1} parent=1 // pred_check
      _
    $region3: #{tpu_custom_call.1} parent=1 // pred_check_branch
      %15 = sbr.rel (0) target = $region5
    $region4: #{tpu_custom_call.1} parent=1 // pred_region
      %s17 = ssub.s32 64, 64
      %18 = vsyncadd [#allocation3], %s17
      %s20 = sshll.u32 [#allocation2], 4
      %s21 = int_to_ptr.vmem [resolvable:$true] %s20
      %23 = dma.hbm_to_vmem [thread:$0]  %s0, 64, %s21, [#allocation3]
    $region5: #{tpu_custom_call.1} parent=1 // pred_fallthru
      _
    // Predicated region
    $region6: #{tpu_custom_call.1} parent=1 // pred_check
      _
    $region7: #{tpu_custom_call.1} parent=1 // pred_check_branch
      %25 = sbr.rel (0) target = $region9
    $region8: #{tpu_custom_call.1} parent=1 // pred_region
      %s27 = ssub.s32 64, 64
      %28 = vsyncadd [#allocation6], %s27
      %s30 = sshll.u32 [#allocation5], 4
      %s31 = int_to_ptr.vmem [resolvable:$true] %s30
      %33 = dma.hbm_to_vmem [thread:$0]  %s1, 64, %s31, [#allocation6]
    $region9: #{tpu_custom_call.1} parent=1 // pred_fallthru
      _
    // Predicated region
    $region10: #{tpu_custom_call.1} parent=1 // pred_check
      _
    $region11: #{tpu_custom_call.1} parent=1 // pred_check_branch
      %35 = sbr.rel (0) target = $region13
    $region12: #{tpu_custom_call.1} parent=1 // pred_region
      _
    $region13: #{tpu_custom_call.1} parent=1 // pred_fallthru
      _
    // Predicated region
    $region14: #{tpu_custom_call.1} parent=1 // pred_check
      _
    $region15: #{tpu_custom_call.1} parent=1 // pred_check_branch
      %37 = sbr.rel (0) target = $region17
    $region16: #{tpu_custom_call.1} parent=1 // pred_region
      %38 = dma.done [#allocation3], 64
    $region17: #{tpu_custom_call.1} parent=1 // pred_fallthru
      _
    // Predicated region
    $region18: #{tpu_custom_call.1} parent=1 // pred_check
      _
    $region19: #{tpu_custom_call.1} parent=1 // pred_check_branch
      %40 = sbr.rel (0) target = $region21
    $region20: #{tpu_custom_call.1} parent=1 // pred_region
      %41 = dma.done [#allocation6], 64
    $region21: #{tpu_custom_call.1} parent=1 // pred_fallthru
      _
    %v42 = vld [vmem:[#allocation2] sm:$0x7]
    %v43 = vmul.f32 %v42, %v42
    %v45 = vrot.slane %v42, 1
    %v47 = vmul.f32 %v42, %v45
    %v48 = vrot.slane %v42, 2
    %v50 = vmul.f32 %v42, %v48
    %v51 = vmul.f32 %v43, %v42
    %v52 = vmul.f32 %v43, %v45
    %v53 = vmul.f32 %v43, %v48
    %v54 = vmul.f32 %v47, %v45
    %v55 = vmul.f32 %v47, %v48
    %v56 = vmul.f32 %v50, %v48
    %v57 = vand.u32 2147483647, %v42
    %vm58 = vcmp.le.f32.partialorder %v57, 0.7853982
    %vm59 = vcmp.lt.s32.totalorder %v42, 0
    %v60 = vand.u32 %v42, 2139095040
    %v61 = vshrl.u32 %v60, 23
    %v62 = vsub.s32 %v61, 127
    %v63 = vand.u32 2147483647, %v42
    %v64 = vand.u32 %v63, 8388607
    %v65 = vor.u32 %v64, 8388608
    %v66 = vsub.s32 0, %v65
    %v67 = vadd.s32 %v62, 1
    %vm68 = vcmp.gt.s32.totalorder %v67, 0
    %v69 = vsel %vm68, %v67, 0
    %v70 = vshrl.u32 %v69, 5
    %v71 = vand.u32 %v69, 31
    %v72 = vsub.s32 32, %v71
    %v73 = vshrl.u32 683565275, %v72
    %v74 = vshll.u32 683565275, %v71
    %v75 = vshrl.u32 2475754826, %v72
    %v76 = vor.u32 %v74, %v75
    %v77 = vshll.u32 2475754826, %v71
    %v78 = vshrl.u32 2131351028, %v72
    %v79 = vor.u32 %v77, %v78
    %v80 = vshll.u32 2131351028, %v71
    %v81 = vshrl.u32 2102212464, %v72
    %v82 = vor.u32 %v80, %v81
    %v83 = vshll.u32 2102212464, %v71
    %v84 = vshrl.u32 920167782, %v72
    %v85 = vor.u32 %v83, %v84
    %v86 = vshll.u32 920167782, %v71
    %v87 = vshrl.u32 1326507024, %v72
    %v88 = vor.u32 %v86, %v87
    %vm89 = vcmp.lt.s32.totalorder %v70, 1
    %vm90 = vcmp.lt.s32.totalorder %v70, 2
    %vm91 = vcmp.lt.s32.totalorder %v70, 3
    %vm92 = vcmp.lt.s32.totalorder %v70, 4
    %v93 = vsel %vm89, %v73, %v76
    %v94 = vsel %vm92, %v82, 2102212464
    %v95 = vsel %vm91, %v79, %v94
    %v96 = vsel %vm90, %v93, %v95
    %v97 = vsel %vm89, %v76, %v79
    %v98 = vsel %vm92, %v85, 920167782
    %v99 = vsel %vm91, %v82, %v98
    %v100 = vsel %vm90, %v97, %v99
    %v101 = vsel %vm89, %v79, %v82
    %v102 = vsel %vm92, %v88, 1326507024
    %v103 = vsel %vm91, %v85, %v102
    %v104 = vsel %vm90, %v101, %v103
    %v105 = vshll.u32 %v65, 8
    %v106 = vmul.u32.u64.compose %v105, %v104
    %v107 = vextract.low.u32 %v106
    %v108 = vextract.high.u32 %v106
    %v109 = vmul.u32.u64.compose %v105, %v100
    %v110 = vextract.low.u32 %v109
    %v111 = vextract.high.u32 %v109
    %v112 = vmul.u32 %v105, %v96
    %v113 = vadd.s32 %v108, %v110
    %vm114 = vc.u32 %v108, %v110
    %v115 = vadd.s32 %v111, 1
    %v116 = vsel %vm114, %v115, %v111
    %v117 = vadd.s32 %v112, %v116
    %v118 = vadd.s32 %v117, 536870912
    %v119 = vshrl.u32 %v118, 30
    %v120 = vshll.u32 %v119, 30
    %v121 = vsub.s32 %v117, %v120
    %vm122 = vcmp.lt.s32.totalorder %v121, 0
    %v123 = vsub.s32 0, %v121
    %v124 = vsel %vm122, %v123, %v121
    %v125 = vclz %v124
    %v126 = vsub.s32 %v125, 2
    %vm127 = vcmp.gt.s32.totalorder 0, %v126
    %v128 = vsel %vm127, 0, %v126
    %v129 = vsub.s32 32, %v128
    %v130 = vshll.u32 %v121, %v128
    %v131 = vshrl.u32 %v113, %v129
    %v132 = vor.u32 %v130, %v131
    %v133 = vsub.s32 4294967266, %v128
    %v134 = vadd.s32 %v133, 127
    %v135 = vshll.u32 %v134, 23
    %v136 = vor.u32 4788187, %v135
    %v137 = vand.u32 2147483647, %v136
    %v139 = vcvt.s32.f32 %v132
    %v140 = vmul.f32 %v139, %v137
    %v141 = vxor.u32 %v140, 2147483648
    %v142 = vsel %vm59, %v141, %v140
    %v143 = vsub.s32 4, %v119
    %v144 = vsel %vm59, %v143, %v119
    %v145 = vsel %vm58, %v42, %v142
    %v146 = vsel %vm58, 0, %v144
    %v147 = vcosq.f32.pop %v145
    %v148 = vsinq.f32.pop %v145
    %vm149 = vweird.f32 %v42
    %v150 = vadd.s32 %v146, 3
    %v151 = vand.u32 %v150, 3
    %vm152 = vcmp.lt.s32.totalorder %v151, 2
    %vm153 = vcmp.eq.s32.totalorder %v151, 0
    %v154 = vxor.u32 %v148, 2147483648
    %v155 = vsel %vm153, %v147, %v154
    %vm156 = vcmp.eq.s32.totalorder %v151, 2
    %v157 = vxor.u32 %v147, 2147483648
    %v158 = vsel %vm156, %v157, %v148
    %v159 = vsel %vm152, %v155, %v158
    %v160 = vsel %vm149, nan, %v159
    %v161 = vrot.slane %v42, 7
    %v164 = vrot.slane %v43, 4
    %v167 = vrot.slane %v47, 3
    %v170 = vrot.slane %v50, 2
    %v172 = vrot.slane %v43, 2
    %v174 = vrot.slane %v47, 1
    %v176 = vrot.slane %v43, 1
    %v179 = vrot.slane %v51, 6
    %v182 = vrot.slane %v52, 5
    %v185 = vrot.slane %v53, 4
    %v188 = vrot.slane %v54, 3
    %v191 = vrot.slane %v55, 2
    %v194 = vrot.slane %v56, 1
    %vm196 = vcmask 1040384
    %v197 = vsel %vm196, 1.0, %v161
    %vm198 = vcmask 1041408
    %v199 = vsel %vm198, %v197, %v161
    %vm200 = vcmask 1042432
    %v201 = vsel %vm200, %v199, %v161
    %vm202 = vcmask 1043456
    %v203 = vsel %vm202, %v201, %v164
    %vm204 = vcmask 1044480
    %v205 = vsel %vm204, %v203, %v167
    %vm206 = vcmask 1045504
    %v207 = vsel %vm206, %v205, %v170
    %vm208 = vcmask 1046528
    %v209 = vsel %vm208, %v207, %v172
    %v210 = vsel %vm196, %v174, %v176
    %v211 = vsel %vm198, %v210, %v179
    %v212 = vsel %vm200, %v211, %v182
    %v213 = vsel %vm202, %v212, %v185
    %v214 = vsel %vm204, %v213, %v188
    %v215 = vsel %vm206, %v214, %v191
    %v216 = vsel %vm208, %v215, %v194
    %v217 = vrot.slane %v51, 1
    %v219 = vrot.slane %v54, 7
    %v221 = vrot.slane %v51, 7
    %v224 = vrot.slane %v160, 4
    %v226 = vsel %vm196, %v217, %v52
    %v227 = vsel %vm198, %v226, %v219
    %v228 = vsel %vm200, %v227, %v221
    %v229 = vsel %vm202, %v228, %v224
    %v230 = vsel %vm204, %v229, %v224
    %v231 = vsel %vm206, %v230, %v224
    %v232 = vld [vmem:[#allocation5] sm:$0x7]
    %v233 = vld [vmem:[%s2] sm:$0x7]
    %v234 = vmul.f32 %v232, %v233
    %vm235 = vcmask 182272
    %236 = vst.msk [vmem:[#allocation8] sm:$0x7] %vm235, %v234
    %vm237 = vcmask 187392
    %v239 = vsel %vm237, %v234, 0
    %v242 = vsel %vm208, %v231, 0
    %244 = vmatprep.subr.mxu0 0.0
    %v245 = vand.u32 %v209, 4294901760
    %246 = vmatpush1.msra.mxu0 %v245
    %247 = vmatprep.subr.mxu0 0.0
    %v248 = vand.u32 %v216, 4294901760
    %249 = vmatpush1.msra.mxu0 %v248
    %250 = vmatprep.subr.mxu0 0.0
    %v251 = vand.u32 %v242, 4294901760
    %252 = vmatpush1.msra.mxu0 %v251
    %253 = vmatprep.subr.mxu0 0.0
    %254 = vmatpush1.msra.mxu0 0.0
    %255 = vmatprep.subr.mxu0 0.0
    %256 = vmatpush1.msra.mxu0 0.0
    %257 = vmatprep.subr.mxu0 0.0
    %258 = vmatpush1.msra.mxu0 0.0
    %259 = vmatprep.subr.mxu0 0.0
    %260 = vmatpush1.msra.mxu0 0.0
    %261 = vmatprep.subr.mxu0 0.0
    %262 = vmatpush1.msra.mxu0 0.0
    %263 = vmatprep.subr.mxu0 0.0
    %264 = vmatpush1.msra.mxu0 0.0
    %265 = vmatprep.subr.mxu0 0.0
    %266 = vmatpush1.msra.mxu0 0.0
    %267 = vmatprep.subr.mxu0 0.0
    %268 = vmatpush1.msra.mxu0 0.0
    %269 = vmatprep.subr.mxu0 0.0
    %270 = vmatpush1.msra.mxu0 0.0
    %271 = vmatprep.subr.mxu0 0.0
    %272 = vmatpush1.msra.mxu0 0.0
    %273 = vmatprep.subr.mxu0 0.0
    %274 = vmatpush1.msra.mxu0 0.0
    %275 = vmatprep.subr.mxu0 0.0
    %276 = vmatpush1.msra.mxu0 0.0
    %277 = vmatprep.subr.mxu0 0.0
    %278 = vmatpush1.msra.mxu0 0.0
    %279 = vmatprep.subr.mxu0 0.0
    %280 = vmatpush1.msra.mxu0 0.0
    %281 = vmatprep.subr.mxu0 0.0
    %282 = vmatpush1.msra.mxu0 0.0
    %283 = vmatprep.subr.mxu0 0.0
    %284 = vmatpush1.msra.mxu0 0.0
    %285 = vmatprep.subr.mxu0 0.0
    %286 = vmatpush1.msra.mxu0 0.0
    %287 = vmatprep.subr.mxu0 0.0
    %288 = vmatpush1.msra.mxu0 0.0
    %289 = vmatprep.subr.mxu0 0.0
    %290 = vmatpush1.msra.mxu0 0.0
    %291 = vmatprep.subr.mxu0 0.0
    %292 = vmatpush1.msra.mxu0 0.0
    %293 = vmatprep.subr.mxu0 0.0
    %294 = vmatpush1.msra.mxu0 0.0
    %295 = vmatprep.subr.mxu0 0.0
    %296 = vmatpush1.msra.mxu0 0.0
    %297 = vmatprep.subr.mxu0 0.0
    %298 = vmatpush1.msra.mxu0 0.0
    %299 = vmatprep.subr.mxu0 0.0
    %300 = vmatpush1.msra.mxu0 0.0
    %301 = vmatprep.subr.mxu0 0.0
    %302 = vmatpush1.msra.mxu0 0.0
    %303 = vmatprep.subr.mxu0 0.0
    %304 = vmatpush1.msra.mxu0 0.0
    %305 = vmatprep.subr.mxu0 0.0
    %306 = vmatpush1.msra.mxu0 0.0
    %307 = vmatprep.subr.mxu0 0.0
    %308 = vmatpush1.msra.mxu0 0.0
    %309 = vmatprep.subr.mxu0 0.0
    %310 = vmatpush1.msra.mxu0 0.0
    %311 = vmatprep.mubr.f32.mxu0 0.0
    %v312 = vand.u32 %v239, 4294901760
    %v313 = vsub.f32 %v239, %v312
    %v314 = vand.u32 %v313, 4294901760
    %v315 = vsub.f32 %v313, %v314
    %v316 = vand.u32 %v315, 4294901760
    %317 = vmatmul.mubr.f32.gmra.mrb[0].mxu0 %v316
    %v318 = vpop.f32.mrb[0].mxu0
    %v319 = vadd.f32 0.0, %v318
    %v320 = vpop.f32.mrb[0].mxu0
    %321 = vdwg.mxu0
    %322 = vmatprep.subr.mxu0 0.0
    %v323 = vand.u32 %v209, 4294901760
    %v324 = vsub.f32 %v209, %v323
    %v325 = vand.u32 %v324, 4294901760
    %v326 = vsub.f32 %v324, %v325
    %v327 = vand.u32 %v326, 4294901760
    %328 = vmatpush1.msra.mxu0 %v327
    %329 = vmatprep.subr.mxu0 0.0
    %v330 = vand.u32 %v216, 4294901760
    %v331 = vsub.f32 %v216, %v330
    %v332 = vand.u32 %v331, 4294901760
    %v333 = vsub.f32 %v331, %v332
    %v334 = vand.u32 %v333, 4294901760
    %335 = vmatpush1.msra.mxu0 %v334
    %336 = vmatprep.subr.mxu0 0.0
    %v337 = vand.u32 %v242, 4294901760
    %v338 = vsub.f32 %v242, %v337
    %v339 = vand.u32 %v338, 4294901760
    %v340 = vsub.f32 %v338, %v339
    %v341 = vand.u32 %v340, 4294901760
    %342 = vmatpush1.msra.mxu0 %v341
    %343 = vmatprep.subr.mxu0 0.0
    %344 = vmatpush1.msra.mxu0 0.0
    %345 = vmatprep.subr.mxu0 0.0
    %346 = vmatpush1.msra.mxu0 0.0
    %347 = vmatprep.subr.mxu0 0.0
    %348 = vmatpush1.msra.mxu0 0.0
    %349 = vmatprep.subr.mxu0 0.0
    %350 = vmatpush1.msra.mxu0 0.0
    %351 = vmatprep.subr.mxu0 0.0
    %352 = vmatpush1.msra.mxu0 0.0
    %353 = vmatprep.subr.mxu0 0.0
    %354 = vmatpush1.msra.mxu0 0.0
    %355 = vmatprep.subr.mxu0 0.0
    %356 = vmatpush1.msra.mxu0 0.0
    %357 = vmatprep.subr.mxu0 0.0
    %358 = vmatpush1.msra.mxu0 0.0
    %359 = vmatprep.subr.mxu0 0.0
    %360 = vmatpush1.msra.mxu0 0.0
    %361 = vmatprep.subr.mxu0 0.0
    %362 = vmatpush1.msra.mxu0 0.0
    %363 = vmatprep.subr.mxu0 0.0
    %364 = vmatpush1.msra.mxu0 0.0
    %365 = vmatprep.subr.mxu0 0.0
    %366 = vmatpush1.msra.mxu0 0.0
    %367 = vmatprep.subr.mxu0 0.0
    %368 = vmatpush1.msra.mxu0 0.0
    %369 = vmatprep.subr.mxu0 0.0
    %370 = vmatpush1.msra.mxu0 0.0
    %371 = vmatprep.subr.mxu0 0.0
    %372 = vmatpush1.msra.mxu0 0.0
    %373 = vmatprep.subr.mxu0 0.0
    %374 = vmatpush1.msra.mxu0 0.0
    %375 = vmatprep.subr.mxu0 0.0
    %376 = vmatpush1.msra.mxu0 0.0
    %377 = vmatprep.subr.mxu0 0.0
    %378 = vmatpush1.msra.mxu0 0.0
    %379 = vmatprep.subr.mxu0 0.0
    %380 = vmatpush1.msra.mxu0 0.0
    %381 = vmatprep.subr.mxu0 0.0
    %382 = vmatpush1.msra.mxu0 0.0
    %383 = vmatprep.subr.mxu0 0.0
    %384 = vmatpush1.msra.mxu0 0.0
    %385 = vmatprep.subr.mxu0 0.0
    %386 = vmatpush1.msra.mxu0 0.0
    %387 = vmatprep.subr.mxu0 0.0
    %388 = vmatpush1.msra.mxu0 0.0
    %389 = vmatprep.subr.mxu0 0.0
    %390 = vmatpush1.msra.mxu0 0.0
    %391 = vmatprep.subr.mxu0 0.0
    %392 = vmatpush1.msra.mxu0 0.0
    %393 = vmatprep.subr.mxu0 0.0
    %394 = vmatpush1.msra.mxu0 0.0
    %395 = vmatprep.subr.mxu0 0.0
    %396 = vmatpush1.msra.mxu0 0.0
    %397 = vmatprep.subr.mxu0 0.0
    %398 = vmatpush1.msra.mxu0 0.0
    %399 = vmatprep.subr.mxu0 0.0
    %400 = vmatpush1.msra.mxu0 0.0
    %401 = vmatprep.mubr.f32.mxu0 0.0
    %v402 = vand.u32 %v239, 4294901760
    %403 = vmatmul.mubr.f32.gmra.mrb[0].mxu0 %v402
    %v404 = vpop.f32.mrb[0].mxu0
    %v405 = vadd.f32 %v319, %v404
    %v406 = vpop.f32.mrb[0].mxu0
    %407 = vdwg.mxu0
    %408 = vmatprep.subr.mxu0 0.0
    %v409 = vand.u32 %v209, 4294901760
    %v410 = vsub.f32 %v209, %v409
    %411 = vmatpush1.msra.mxu0 %v410
    %412 = vmatprep.subr.mxu0 0.0
    %v413 = vand.u32 %v216, 4294901760
    %v414 = vsub.f32 %v216, %v413
    %415 = vmatpush1.msra.mxu0 %v414
    %416 = vmatprep.subr.mxu0 0.0
    %v417 = vand.u32 %v242, 4294901760
    %v418 = vsub.f32 %v242, %v417
    %419 = vmatpush1.msra.mxu0 %v418
    %420 = vmatprep.subr.mxu0 0.0
    %421 = vmatpush1.msra.mxu0 0.0
    %422 = vmatprep.subr.mxu0 0.0
    %423 = vmatpush1.msra.mxu0 0.0
    %424 = vmatprep.subr.mxu0 0.0
    %425 = vmatpush1.msra.mxu0 0.0
    %426 = vmatprep.subr.mxu0 0.0
    %427 = vmatpush1.msra.mxu0 0.0
    %428 = vmatprep.subr.mxu0 0.0
    %429 = vmatpush1.msra.mxu0 0.0
    %430 = vmatprep.subr.mxu0 0.0
    %431 = vmatpush1.msra.mxu0 0.0
    %432 = vmatprep.subr.mxu0 0.0
    %433 = vmatpush1.msra.mxu0 0.0
    %434 = vmatprep.subr.mxu0 0.0
    %435 = vmatpush1.msra.mxu0 0.0
    %436 = vmatprep.subr.mxu0 0.0
    %437 = vmatpush1.msra.mxu0 0.0
    %438 = vmatprep.subr.mxu0 0.0
    %439 = vmatpush1.msra.mxu0 0.0
    %440 = vmatprep.subr.mxu0 0.0
    %441 = vmatpush1.msra.mxu0 0.0
    %442 = vmatprep.subr.mxu0 0.0
    %443 = vmatpush1.msra.mxu0 0.0
    %444 = vmatprep.subr.mxu0 0.0
    %445 = vmatpush1.msra.mxu0 0.0
    %446 = vmatprep.subr.mxu0 0.0
    %447 = vmatpush1.msra.mxu0 0.0
    %448 = vmatprep.subr.mxu0 0.0
    %449 = vmatpush1.msra.mxu0 0.0
    %450 = vmatprep.subr.mxu0 0.0
    %451 = vmatpush1.msra.mxu0 0.0
    %452 = vmatprep.subr.mxu0 0.0
    %453 = vmatpush1.msra.mxu0 0.0
    %454 = vmatprep.subr.mxu0 0.0
    %455 = vmatpush1.msra.mxu0 0.0
    %456 = vmatprep.subr.mxu0 0.0
    %457 = vmatpush1.msra.mxu0 0.0
    %458 = vmatprep.subr.mxu0 0.0
    %459 = vmatpush1.msra.mxu0 0.0
    %460 = vmatprep.subr.mxu0 0.0
    %461 = vmatpush1.msra.mxu0 0.0
    %462 = vmatprep.subr.mxu0 0.0
    %463 = vmatpush1.msra.mxu0 0.0
    %464 = vmatprep.subr.mxu0 0.0
    %465 = vmatpush1.msra.mxu0 0.0
    %466 = vmatprep.subr.mxu0 0.0
    %467 = vmatpush1.msra.mxu0 0.0
    %468 = vmatprep.subr.mxu0 0.0
    %469 = vmatpush1.msra.mxu0 0.0
    %470 = vmatprep.subr.mxu0 0.0
    %471 = vmatpush1.msra.mxu0 0.0
    %472 = vmatprep.subr.mxu0 0.0
    %473 = vmatpush1.msra.mxu0 0.0
    %474 = vmatprep.subr.mxu0 0.0
    %475 = vmatpush1.msra.mxu0 0.0
    %476 = vmatprep.subr.mxu0 0.0
    %477 = vmatpush1.msra.mxu0 0.0
    %478 = vmatprep.mubr.f32.mxu0 0.0
    %v479 = vand.u32 %v239, 4294901760
    %v480 = vsub.f32 %v239, %v479
    %481 = vmatmul.mubr.f32.gmra.mrb[0].mxu0 %v480
    %v482 = vpop.f32.mrb[0].mxu0
    %v483 = vadd.f32 %v405, %v482
    %v484 = vpop.f32.mrb[0].mxu0
    %485 = vdwg.mxu0
    %486 = vmatprep.subr.mxu0 0.0
    %v487 = vand.u32 %v209, 4294901760
    %488 = vmatpush1.msra.mxu0 %v487
    %489 = vmatprep.subr.mxu0 0.0
    %v490 = vand.u32 %v216, 4294901760
    %491 = vmatpush1.msra.mxu0 %v490
    %492 = vmatprep.subr.mxu0 0.0
    %v493 = vand.u32 %v242, 4294901760
    %494 = vmatpush1.msra.mxu0 %v493
    %495 = vmatprep.subr.mxu0 0.0
    %496 = vmatpush1.msra.mxu0 0.0
    %497 = vmatprep.subr.mxu0 0.0
    %498 = vmatpush1.msra.mxu0 0.0
    %499 = vmatprep.subr.mxu0 0.0
    %500 = vmatpush1.msra.mxu0 0.0
    %501 = vmatprep.subr.mxu0 0.0
    %502 = vmatpush1.msra.mxu0 0.0
    %503 = vmatprep.subr.mxu0 0.0
    %504 = vmatpush1.msra.mxu0 0.0
    %505 = vmatprep.subr.mxu0 0.0
    %506 = vmatpush1.msra.mxu0 0.0
    %507 = vmatprep.subr.mxu0 0.0
    %508 = vmatpush1.msra.mxu0 0.0
    %509 = vmatprep.subr.mxu0 0.0
    %510 = vmatpush1.msra.mxu0 0.0
    %511 = vmatprep.subr.mxu0 0.0
    %512 = vmatpush1.msra.mxu0 0.0
    %513 = vmatprep.subr.mxu0 0.0
    %514 = vmatpush1.msra.mxu0 0.0
    %515 = vmatprep.subr.mxu0 0.0
    %516 = vmatpush1.msra.mxu0 0.0
    %517 = vmatprep.subr.mxu0 0.0
    %518 = vmatpush1.msra.mxu0 0.0
    %519 = vmatprep.subr.mxu0 0.0
    %520 = vmatpush1.msra.mxu0 0.0
    %521 = vmatprep.subr.mxu0 0.0
    %522 = vmatpush1.msra.mxu0 0.0
    %523 = vmatprep.subr.mxu0 0.0
    %524 = vmatpush1.msra.mxu0 0.0
    %525 = vmatprep.subr.mxu0 0.0
    %526 = vmatpush1.msra.mxu0 0.0
    %527 = vmatprep.subr.mxu0 0.0
    %528 = vmatpush1.msra.mxu0 0.0
    %529 = vmatprep.subr.mxu0 0.0
    %530 = vmatpush1.msra.mxu0 0.0
    %531 = vmatprep.subr.mxu0 0.0
    %532 = vmatpush1.msra.mxu0 0.0
    %533 = vmatprep.subr.mxu0 0.0
    %534 = vmatpush1.msra.mxu0 0.0
    %535 = vmatprep.subr.mxu0 0.0
    %536 = vmatpush1.msra.mxu0 0.0
    %537 = vmatprep.subr.mxu0 0.0
    %538 = vmatpush1.msra.mxu0 0.0
    %539 = vmatprep.subr.mxu0 0.0
    %540 = vmatpush1.msra.mxu0 0.0
    %541 = vmatprep.subr.mxu0 0.0
    %542 = vmatpush1.msra.mxu0 0.0
    %543 = vmatprep.subr.mxu0 0.0
    %544 = vmatpush1.msra.mxu0 0.0
    %545 = vmatprep.subr.mxu0 0.0
    %546 = vmatpush1.msra.mxu0 0.0
    %547 = vmatprep.subr.mxu0 0.0
    %548 = vmatpush1.msra.mxu0 0.0
    %549 = vmatprep.subr.mxu0 0.0
    %550 = vmatpush1.msra.mxu0 0.0
    %551 = vmatprep.subr.mxu0 0.0
    %552 = vmatpush1.msra.mxu0 0.0
    %553 = vmatprep.mubr.f32.mxu0 0.0
    %v554 = vand.u32 %v239, 4294901760
    %v555 = vsub.f32 %v239, %v554
    %v556 = vand.u32 %v555, 4294901760
    %557 = vmatmul.mubr.f32.gmra.mrb[0].mxu0 %v556
    %v558 = vpop.f32.mrb[0].mxu0
    %v559 = vadd.f32 %v483, %v558
    %v560 = vpop.f32.mrb[0].mxu0
    %561 = vdwg.mxu0
    %562 = vmatprep.subr.mxu0 0.0
    %v563 = vand.u32 %v209, 4294901760
    %v564 = vsub.f32 %v209, %v563
    %v565 = vand.u32 %v564, 4294901760
    %566 = vmatpush1.msra.mxu0 %v565
    %567 = vmatprep.subr.mxu0 0.0
    %v568 = vand.u32 %v216, 4294901760
    %v569 = vsub.f32 %v216, %v568
    %v570 = vand.u32 %v569, 4294901760
    %571 = vmatpush1.msra.mxu0 %v570
    %572 = vmatprep.subr.mxu0 0.0
    %v573 = vand.u32 %v242, 4294901760
    %v574 = vsub.f32 %v242, %v573
    %v575 = vand.u32 %v574, 4294901760
    %576 = vmatpush1.msra.mxu0 %v575
    %577 = vmatprep.subr.mxu0 0.0
    %578 = vmatpush1.msra.mxu0 0.0
    %579 = vmatprep.subr.mxu0 0.0
    %580 = vmatpush1.msra.mxu0 0.0
    %581 = vmatprep.subr.mxu0 0.0
    %582 = vmatpush1.msra.mxu0 0.0
    %583 = vmatprep.subr.mxu0 0.0
    %584 = vmatpush1.msra.mxu0 0.0
    %585 = vmatprep.subr.mxu0 0.0
    %586 = vmatpush1.msra.mxu0 0.0
    %587 = vmatprep.subr.mxu0 0.0
    %588 = vmatpush1.msra.mxu0 0.0
    %589 = vmatprep.subr.mxu0 0.0
    %590 = vmatpush1.msra.mxu0 0.0
    %591 = vmatprep.subr.mxu0 0.0
    %592 = vmatpush1.msra.mxu0 0.0
    %593 = vmatprep.subr.mxu0 0.0
    %594 = vmatpush1.msra.mxu0 0.0
    %595 = vmatprep.subr.mxu0 0.0
    %596 = vmatpush1.msra.mxu0 0.0
    %597 = vmatprep.subr.mxu0 0.0
    %598 = vmatpush1.msra.mxu0 0.0
    %599 = vmatprep.subr.mxu0 0.0
    %600 = vmatpush1.msra.mxu0 0.0
    %601 = vmatprep.subr.mxu0 0.0
    %602 = vmatpush1.msra.mxu0 0.0
    %603 = vmatprep.subr.mxu0 0.0
    %604 = vmatpush1.msra.mxu0 0.0
    %605 = vmatprep.subr.mxu0 0.0
    %606 = vmatpush1.msra.mxu0 0.0
    %607 = vmatprep.subr.mxu0 0.0
    %608 = vmatpush1.msra.mxu0 0.0
    %609 = vmatprep.subr.mxu0 0.0
    %610 = vmatpush1.msra.mxu0 0.0
    %611 = vmatprep.subr.mxu0 0.0
    %612 = vmatpush1.msra.mxu0 0.0
    %613 = vmatprep.subr.mxu0 0.0
    %614 = vmatpush1.msra.mxu0 0.0
    %615 = vmatprep.subr.mxu0 0.0
    %616 = vmatpush1.msra.mxu0 0.0
    %617 = vmatprep.subr.mxu0 0.0
    %618 = vmatpush1.msra.mxu0 0.0
    %619 = vmatprep.subr.mxu0 0.0
    %620 = vmatpush1.msra.mxu0 0.0
    %621 = vmatprep.subr.mxu0 0.0
    %622 = vmatpush1.msra.mxu0 0.0
    %623 = vmatprep.subr.mxu0 0.0
    %624 = vmatpush1.msra.mxu0 0.0
    %625 = vmatprep.subr.mxu0 0.0
    %626 = vmatpush1.msra.mxu0 0.0
    %627 = vmatprep.subr.mxu0 0.0
    %628 = vmatpush1.msra.mxu0 0.0
    %629 = vmatprep.subr.mxu0 0.0
    %630 = vmatpush1.msra.mxu0 0.0
    %631 = vmatprep.subr.mxu0 0.0
    %632 = vmatpush1.msra.mxu0 0.0
    %633 = vmatprep.subr.mxu0 0.0
    %634 = vmatpush1.msra.mxu0 0.0
    %635 = vmatprep.mubr.f32.mxu0 0.0
    %v636 = vand.u32 %v239, 4294901760
    %637 = vmatmul.mubr.f32.gmra.mrb[0].mxu0 %v636
    %v638 = vpop.f32.mrb[0].mxu0
    %v639 = vadd.f32 %v559, %v638
    %v640 = vpop.f32.mrb[0].mxu0
    %641 = vdwg.mxu0
    %642 = vmatprep.subr.mxu0 0.0
    %v643 = vand.u32 %v209, 4294901760
    %644 = vmatpush1.msra.mxu0 %v643
    %645 = vmatprep.subr.mxu0 0.0
    %v646 = vand.u32 %v216, 4294901760
    %647 = vmatpush1.msra.mxu0 %v646
    %648 = vmatprep.subr.mxu0 0.0
    %v649 = vand.u32 %v242, 4294901760
    %650 = vmatpush1.msra.mxu0 %v649
    %651 = vmatprep.subr.mxu0 0.0
    %652 = vmatpush1.msra.mxu0 0.0
    %653 = vmatprep.subr.mxu0 0.0
    %654 = vmatpush1.msra.mxu0 0.0
    %655 = vmatprep.subr.mxu0 0.0
    %656 = vmatpush1.msra.mxu0 0.0
    %657 = vmatprep.subr.mxu0 0.0
    %658 = vmatpush1.msra.mxu0 0.0
    %659 = vmatprep.subr.mxu0 0.0
    %660 = vmatpush1.msra.mxu0 0.0
    %661 = vmatprep.subr.mxu0 0.0
    %662 = vmatpush1.msra.mxu0 0.0
    %663 = vmatprep.subr.mxu0 0.0
    %664 = vmatpush1.msra.mxu0 0.0
    %665 = vmatprep.subr.mxu0 0.0
    %666 = vmatpush1.msra.mxu0 0.0
    %667 = vmatprep.subr.mxu0 0.0
    %668 = vmatpush1.msra.mxu0 0.0
    %669 = vmatprep.subr.mxu0 0.0
    %670 = vmatpush1.msra.mxu0 0.0
    %671 = vmatprep.subr.mxu0 0.0
    %672 = vmatpush1.msra.mxu0 0.0
    %673 = vmatprep.subr.mxu0 0.0
    %674 = vmatpush1.msra.mxu0 0.0
    %675 = vmatprep.subr.mxu0 0.0
    %676 = vmatpush1.msra.mxu0 0.0
    %677 = vmatprep.subr.mxu0 0.0
    %678 = vmatpush1.msra.mxu0 0.0
    %679 = vmatprep.subr.mxu0 0.0
    %680 = vmatpush1.msra.mxu0 0.0
    %681 = vmatprep.subr.mxu0 0.0
    %682 = vmatpush1.msra.mxu0 0.0
    %683 = vmatprep.subr.mxu0 0.0
    %684 = vmatpush1.msra.mxu0 0.0
    %685 = vmatprep.subr.mxu0 0.0
    %686 = vmatpush1.msra.mxu0 0.0
    %687 = vmatprep.subr.mxu0 0.0
    %688 = vmatpush1.msra.mxu0 0.0
    %689 = vmatprep.subr.mxu0 0.0
    %690 = vmatpush1.msra.mxu0 0.0
    %691 = vmatprep.subr.mxu0 0.0
    %692 = vmatpush1.msra.mxu0 0.0
    %693 = vmatprep.subr.mxu0 0.0
    %694 = vmatpush1.msra.mxu0 0.0
    %695 = vmatprep.subr.mxu0 0.0
    %696 = vmatpush1.msra.mxu0 0.0
    %697 = vmatprep.subr.mxu0 0.0
    %698 = vmatpush1.msra.mxu0 0.0
    %699 = vmatprep.subr.mxu0 0.0
    %700 = vmatpush1.msra.mxu0 0.0
    %701 = vmatprep.subr.mxu0 0.0
    %702 = vmatpush1.msra.mxu0 0.0
    %703 = vmatprep.subr.mxu0 0.0
    %704 = vmatpush1.msra.mxu0 0.0
    %705 = vmatprep.subr.mxu0 0.0
    %706 = vmatpush1.msra.mxu0 0.0
    %707 = vmatprep.subr.mxu0 0.0
    %708 = vmatpush1.msra.mxu0 0.0
    %709 = vmatprep.mubr.f32.mxu0 0.0
    %v710 = vand.u32 %v239, 4294901760
    %711 = vmatmul.mubr.f32.gmra.mrb[0].mxu0 %v710
    %v712 = vpop.f32.mrb[0].mxu0
    %v713 = vadd.f32 %v639, %v712
    %v714 = vpop.f32.mrb[0].mxu0
    %715 = vdwg.mxu0
    %vm716 = vcmask 59392
    %717 = vst.msk [vmem:[#allocation7] sm:$0x7] %vm716, %v713
    // Predicated region
    $region22: #{tpu_custom_call.1} parent=1 // pred_check
      _
    $region23: #{tpu_custom_call.1} parent=1 // pred_check_branch
      %719 = sbr.rel (0) target = $region25
    $region24: #{tpu_custom_call.1} parent=1 // pred_region
      %s721 = ssub.s32 64, 64
      %722 = vsyncadd [#allocation4], %s721
      %s724 = sshll.u32 [#allocation7], 4
      %s725 = int_to_ptr.vmem [resolvable:$true] %s724
      %727 = dma.vmem_to_hbm [thread:$0]  %s725, 64, %s3, [#allocation4]
    $region25: #{tpu_custom_call.1} parent=1 // pred_fallthru
      _
    // Predicated region
    $region26: #{tpu_custom_call.1} parent=1 // pred_check
      _
    $region27: #{tpu_custom_call.1} parent=1 // pred_check_branch
      %729 = sbr.rel (0) target = $region29
    $region28: #{tpu_custom_call.1} parent=1 // pred_region
      %s731 = ssub.s32 64, 64
      %732 = vsyncadd [#allocation9], %s731
      %s734 = sshll.u32 [#allocation8], 4
      %s735 = int_to_ptr.vmem [resolvable:$true] %s734
      %737 = dma.vmem_to_hbm [thread:$0]  %s735, 64, %s4, [#allocation9]
    $region29: #{tpu_custom_call.1} parent=1 // pred_fallthru
      _
    // Predicated region
    $region30: #{tpu_custom_call.1} parent=1 // pred_check
      _
    $region31: #{tpu_custom_call.1} parent=1 // pred_check_branch
      %739 = sbr.rel (0) target = $region33
    $region32: #{tpu_custom_call.1} parent=1 // pred_region
      %740 = dma.done [#allocation4], 64
    $region33: #{tpu_custom_call.1} parent=1 // pred_fallthru
      _
    // Predicated region
    $region34: #{tpu_custom_call.1} parent=1 // pred_check
      _
    $region35: #{tpu_custom_call.1} parent=1 // pred_check_branch
      %742 = sbr.rel (0) target = $region37
    $region36: #{tpu_custom_call.1} parent=1 // pred_region
      %743 = dma.done [#allocation9], 64
    $region37: #{tpu_custom_call.1} parent=1 // pred_fallthru
      _
    %744 = vsyncpa [#allocation3], 1
    %745 = vsyncpa [#allocation6], 1
    %746 = vsyncpa [#allocation4], 1
    %747 = vsyncpa [#allocation9], 1

</llo_original>
